<compile_context>
chip_gen: v7x
topology: tpu7x:2x2x1
jax: 0.10.0
libtpu: 0.0.40
codegen_flags: <defaults>
</compile_context>

<pallas_src>
import math
import functools

import jax
import jax.numpy as jnp
from jax.experimental import pallas as pl
from jax.experimental.pallas import tpu as pltpu


def _round_up(x, m):
    return ((x + m - 1) // m) * m


def _arcface_kernel(fea_ref, w_ref, inv_ref, label_ref, out_ref, *,
                    s, cos_m, sin_m, th, mm, easy_margin, tile_c):
    # fea_ref  : (1, Bp, Ep)  bf16, rows already L2-normalized (padded rows 0)
    # w_ref    : (1, Ep, Tc)  bf16, raw (un-normalized) class weights, E-padded 0
    # inv_ref  : (1, 1, Tc)   f32, per-class 1/||w_c||
    # label_ref: (Bp, 1)      int32 (padded rows = -1)
    # out_ref  : (1, Bp, Tc)  f32
    c_base = pl.program_id(1) * tile_c

    # bf16 MXU matmul with f32 accumulation; the per-class L2 normalization is
    # a post-dot column scale (commutes with the matmul).
    raw = jnp.dot(fea_ref[0], w_ref[0], preferred_element_type=jnp.float32)
    cosine = raw * inv_ref[0]                                    # [Bp, Tc]

    label = label_ref[...]                                       # [Bp, 1]
    col = c_base + jax.lax.broadcasted_iota(jnp.int32, cosine.shape, 1)
    hit = col == label                                           # [Bp, Tc]

    # Per-row margin correction: only the target-class column needs phi, so
    # sqrt/clip/margin math runs on [Bp, 1] instead of the full tile.  Rows
    # whose label is not in this tile (or padded/ragged columns) get -2.0 and
    # never select the phi branch.
    cos_t = jnp.max(jnp.where(hit, cosine, -2.0), axis=-1, keepdims=True)
    sin_t = jnp.sqrt(jnp.clip(1.0 - cos_t * cos_t, 0.0, 1.0))
    phi_t = cos_t * cos_m - sin_t * sin_m
    if easy_margin:
        phi_t = jnp.where(cos_t > 0.0, phi_t, cos_t)
    else:
        phi_t = jnp.where(cos_t > th, phi_t, cos_t - mm)

    out_ref[0] = jnp.where(hit, phi_t * s, cosine * s).astype(out_ref.dtype)


def md_arcface_heads(fea_stack, w_t_stack, label, *, margin_s, margin_m,
                     easy_margin, tile_c=None,
                     vmem_budget_bytes=24 * 1024 * 1024):
    """fea_stack: [H, B, E] f32, w_t_stack: [H, Ep, Cls] bf16 (transposed,
    E zero-padded), label: [B] int -> [H, B, Cls] f32 scaled logits."""
    nheads, B, E = fea_stack.shape
    _, E_pad, C = w_t_stack.shape
    assert E_pad >= E and E_pad % 128 == 0

    # --- hoisted fea L2-norm (tiny versus the weight stream) ---------------
    fea32 = fea_stack.astype(jnp.float32)
    fea_n = fea32 * jax.lax.rsqrt(
        jnp.maximum(jnp.sum(fea32 * fea32, axis=-1, keepdims=True), 1e-24))

    # Pad B to the bf16 sublane multiple (16) and E to the stored E_pad so the
    # kernel sees full, unmasked vregs / stores.
    B_pad = _round_up(max(B, 16), 16)
    fea_n = jnp.pad(fea_n, ((0, 0), (0, B_pad - B), (0, E_pad - E)))
    fea_b = fea_n.astype(jnp.bfloat16)

    label2d = label.astype(jnp.int32).reshape(B, 1)
    if B_pad != B:
        label2d = jnp.pad(label2d, ((0, B_pad - B), (0, 0)), constant_values=-1)

    # --- per-class inverse norms: one streaming read of the bf16 weights,
    # producing a tiny [H,1,Cls] f32 array.  No normalized / transposed weight
    # tensor is ever materialized in HBM. ------------------------------------
    w32 = w_t_stack.astype(jnp.float32)
    inv_norm = jax.lax.rsqrt(
        jnp.maximum(jnp.sum(w32 * w32, axis=1, keepdims=True), 1e-24))  # [H,1,C]

    # --- class-tile sizing against total double-buffered VMEM residency ----
    fixed_bytes = 2 * B_pad * E_pad * 2 + 2 * B_pad * 128 * 4   # fea + label bufs
    per_col = 2 * (E_pad * 2 + B_pad * 4 + 4)                   # w(bf16)+out(f32)+inv
    if tile_c is None:
        avail = max(vmem_budget_bytes - fixed_bytes, per_col * 128)
        tile_c = max(128, min(2048, (avail // per_col) // 128 * 128))
    tile_c = min(tile_c, _round_up(C, 128))

    resident = fixed_bytes + tile_c * per_col
    vmem_limit = int(min(max(resident + (8 << 20), 32 << 20), 48 << 20))

    kern = functools.partial(
        _arcface_kernel,
        s=float(margin_s),
        cos_m=math.cos(margin_m),
        sin_m=math.sin(margin_m),
        th=math.cos(math.pi - margin_m),
        mm=math.sin(math.pi - margin_m) * margin_m,
        easy_margin=bool(easy_margin),
        tile_c=tile_c,
    )

    out = pl.pallas_call(
        kern,
        out_shape=jax.ShapeDtypeStruct((nheads, B_pad, C), jnp.float32),
        grid_spec=pltpu.PrefetchScalarGridSpec(
            num_scalar_prefetch=0,
            grid=(nheads, pl.cdiv(C, tile_c)),
            in_specs=[
                pl.BlockSpec((1, B_pad, E_pad), lambda h, c: (h, 0, 0)),
                pl.BlockSpec((1, E_pad, tile_c), lambda h, c: (h, 0, c)),
                pl.BlockSpec((1, 1, tile_c), lambda h, c: (h, 0, c)),
                pl.BlockSpec((B_pad, 1), lambda h, c: (0, 0)),
            ],
            out_specs=pl.BlockSpec((1, B_pad, tile_c), lambda h, c: (h, 0, c)),
        ),
        compiler_params=pltpu.CompilerParams(
            dimension_semantics=("parallel", "parallel"),
            vmem_limit_bytes=vmem_limit),
    )(fea_b, w_t_stack, inv_norm, label2d)

    if B_pad != B:
        out = out[:, :B, :]
    return out


# ----------------------------------------------------------------------------
# MdArcface module (parameters initialized deterministically in-script)
# ----------------------------------------------------------------------------
class MdArcfacePallas:
    def __init__(self, emb_size, num_class, *, margin_s, margin_m, easy_margin,
                 image_shape, key):
        self.emb_size = emb_size
        self.num_class = num_class
        self.s = margin_s
        self.m = margin_m
        self.easy_margin = easy_margin
        assert self.s > 0.0 and self.m >= 0.0 and self.m < math.pi / 2

        self.e_pad = _round_up(emb_size, 128)

        k_backbone, k1, k2, k3, k4 = jax.random.split(key, 5)

        # Synthetic backbone: 4 independent linear projections of the
        # flattened NCHW image -> [B, emb_size] each.
        _, C, H, W = image_shape
        in_dim = C * H * W
        self.backbone_w = jax.random.normal(
            k_backbone, (4, in_dim, emb_size), jnp.float32) * 0.02

        # ArcFace class weights, xavier_uniform_ on [num_class, emb_size];
        # stored ONCE in the kernel-friendly layout: transposed to [E, Cls],
        # E zero-padded to a lane multiple, cast to bf16.  No per-step HBM
        # normalize / transpose / pad passes.
        def xavier(k):
            bound = math.sqrt(6.0 / (emb_size + num_class))
            return jax.random.uniform(k, (num_class, emb_size), jnp.float32,
                                      minval=-bound, maxval=bound)

        w = jnp.stack([xavier(k1), xavier(k2), xavier(k3), xavier(k4)])  # [4,Cls,E]
        w_t = jnp.transpose(w, (0, 2, 1))                                # [4,E,Cls]
        w_t = jnp.pad(w_t, ((0, 0), (0, self.e_pad - emb_size), (0, 0)))
        self.weight_t = w_t.astype(jnp.bfloat16)                         # [4,Ep,Cls]

    def backbone(self, image):
        B = image.shape[0]
        flat = image.reshape(B, -1).astype(jnp.float32)           # glue: reshape
        return jnp.einsum('bi,hie->hbe', flat, self.backbone_w)   # [4, B, E]

    def forward(self, label, image, weight=None):
        # TODO(synk): `weight is not None` branch (external weight dict) not implemented.
        feas = self.backbone(image)                                # [4, B, E]
        fea1, fea2, fea3, fea4 = feas[0], feas[1], feas[2], feas[3]
        if label is None:
            return fea4
        outs = md_arcface_heads(feas, self.weight_t, label,
                                margin_s=self.s, margin_m=self.m,
                                easy_margin=self.easy_margin)
        return ([outs[0], outs[1], outs[2], outs[3]],
                [fea1, fea2, fea3, fea4])


# Pure-JAX reference of Arcface.compute matching the kernel's quantization
# (bf16 weights/embeddings, per-class norm applied as a post-dot column scale).
def _ref_compute_bf16(fea, w_t_bf16, label, s, m, easy_margin):
    E = fea.shape[1]
    fea32 = fea.astype(jnp.float32)
    fea_n = fea32 * jax.lax.rsqrt(
        jnp.maximum(jnp.sum(fea32 * fea32, axis=-1, keepdims=True), 1e-24))
    fea_q = fea_n.astype(jnp.bfloat16).astype(jnp.float32)
    w32 = w_t_bf16.astype(jnp.float32)                          # [Ep, Cls]
    inv = jax.lax.rsqrt(jnp.maximum(jnp.sum(w32 * w32, axis=0), 1e-24))
    cosine = jnp.dot(fea_q, w32[:E, :],
                     precision=jax.lax.Precision.HIGHEST) * inv
    sine = jnp.sqrt(jnp.clip(1.0 - cosine ** 2, 0.0, 1.0))
    phi = cosine * math.cos(m) - sine * math.sin(m)
    if easy_margin:
        phi = jnp.where(cosine > 0, phi, cosine)
    else:
        th = math.cos(math.pi - m)
        mm = math.sin(math.pi - m) * m
        phi = jnp.where(cosine > th, phi, cosine - mm)
    one_hot = jax.nn.one_hot(label, cosine.shape[1], dtype=jnp.float32)
    return (one_hot * phi + (1.0 - one_hot) * cosine) * s


if __name__ == "__main__":
    B, C_in, H, W = 2, 4, 16, 16
    emb_size, num_class = 32, 128

    key = jax.random.PRNGKey(0)
    k_img, k_lbl, k_mod = jax.random.split(key, 3)

    image = jax.random.normal(k_img, (B, C_in, H, W), jnp.float32)
    label = jax.random.randint(k_lbl, (B,), 0, num_class, jnp.int32)

    module = MdArcfacePallas(emb_size, num_class,
                             margin_s=64.0, margin_m=0.5, easy_margin=False,
                             image_shape=(B, C_in, H, W), key=k_mod)

    outs, feats = module.forward(label, image)
    outs = [jax.block_until_ready(o) for o in outs]
    feats = [jax.block_until_ready(f) for f in feats]

    # check against pure-JAX reference (same bf16 quantization of inputs)
    feas = module.backbone(image)
    for h in range(4):
        ref = _ref_compute_bf16(feas[h], module.weight_t[h], label,
                                64.0, 0.5, False)
        diff = float(jnp.max(jnp.abs(outs[h] - ref)))
        assert jnp.allclose(outs[h], ref, atol=5e-2, rtol=1e-2), \
            f"head {h} mismatch vs reference (max abs diff {diff})"

    # label=None path returns the last embedding
    emb_only = jax.block_until_ready(module.forward(None, image))
    assert emb_only.shape == (B, emb_size)

    print("KERNEL_OK")
</pallas_src>

<mosaic_0001>
module attributes {stable_mosaic.version = 11 : i64} {
  func.func @_arcface_kernel(%arg0: i32, %arg1: i32, %arg2: memref<1x16x128xbf16, #tpu.memory_space<vmem>>, %arg3: memref<1x128x128xbf16, #tpu.memory_space<vmem>>, %arg4: memref<1x1x128xf32, #tpu.memory_space<vmem>>, %arg5: memref<16x1xi32, #tpu.memory_space<vmem>>, %arg6: memref<1x16x128xf32, #tpu.memory_space<vmem>>) attributes {dimension_semantics = [#tpu.dimension_semantics<parallel>, #tpu.dimension_semantics<parallel>], iteration_bounds = array<i64: 4, 1>, scalar_prefetch = 0 : i64, scratch_operands = 0 : i64, tpu.core_type = #tpu.core_type<tc>, window_params = [{transform_indices = @transform_0, window_bounds = array<i64: 1, 16, 128>}, {transform_indices = @transform_1, window_bounds = array<i64: 1, 128, 128>}, {transform_indices = @transform_2, window_bounds = array<i64: 1, 1, 128>}, {pipeline_mode = #tpu.pipeline_mode<synchronous>, transform_indices = @transform_3, window_bounds = array<i64: 16, 1>}, {transform_indices = @transform_4, window_bounds = array<i64: 1, 16, 128>}]} {
    %c128_i32 = arith.constant 128 : i32
    %0 = arith.muli %arg1, %c128_i32 : i32
    %c0 = arith.constant 0 : index
    %c0_0 = arith.constant 0 : index
    %c0_1 = arith.constant 0 : index
    %1 = vector.load %arg2[%c0, %c0_0, %c0_1] : memref<1x16x128xbf16, #tpu.memory_space<vmem>>, vector<1x16x128xbf16>
    %2 = vector.shape_cast %1 : vector<1x16x128xbf16> to vector<16x128xbf16>
    %c0_2 = arith.constant 0 : index
    %c0_3 = arith.constant 0 : index
    %c0_4 = arith.constant 0 : index
    %3 = vector.load %arg3[%c0_2, %c0_3, %c0_4] : memref<1x128x128xbf16, #tpu.memory_space<vmem>>, vector<1x128x128xbf16>
    %4 = vector.shape_cast %3 : vector<1x128x128xbf16> to vector<128x128xbf16>
    %cst = arith.constant dense<0.000000e+00> : vector<16x128xf32>
    %5 = tpu.matmul %2, %4, %cst {dimension_numbers = #tpu.dot_dimension_numbers<[1], [0], [0], [1], [0, 0, 1, 1], [], []>} : vector<16x128xbf16>, vector<128x128xbf16>, vector<16x128xf32> -> vector<16x128xf32>
    %c0_5 = arith.constant 0 : index
    %c0_6 = arith.constant 0 : index
    %c0_7 = arith.constant 0 : index
    %6 = vector.load %arg4[%c0_5, %c0_6, %c0_7] : memref<1x1x128xf32, #tpu.memory_space<vmem>>, vector<1x1x128xf32>
    %7 = vector.shape_cast %6 : vector<1x1x128xf32> to vector<1x128xf32>
    %8 = vector.broadcast %7 : vector<1x128xf32> to vector<16x128xf32>
    %9 = arith.mulf %5, %8 : vector<16x128xf32>
    %c0_8 = arith.constant 0 : index
    %c0_9 = arith.constant 0 : index
    %10 = vector.load %arg5[%c0_8, %c0_9] : memref<16x1xi32, #tpu.memory_space<vmem>>, vector<16x1xi32>
    %11 = tpu.iota {dimensions = array<i32: 1>} : vector<16x128xi32>
    %12 = vector.broadcast %0 : i32 to vector<16x128xi32>
    %13 = arith.addi %12, %11 : vector<16x128xi32>
    %14 = vector.broadcast %10 : vector<16x1xi32> to vector<16x128xi32>
    %15 = arith.cmpi eq, %13, %14 : vector<16x128xi32>
    %cst_10 = arith.constant -2.000000e+00 : f32
    %16 = vector.broadcast %cst_10 : f32 to vector<16x128xf32>
    %17 = arith.select %15, %9, %16 : vector<16x128xi1>, vector<16x128xf32>
    %cst_11 = arith.constant dense<0xFF800000> : vector<16xf32>
    %18 = vector.multi_reduction <maximumf>, %17, %cst_11 [1] : vector<16x128xf32> to vector<16xf32>
    %19 = vector.shape_cast %18 : vector<16xf32> to vector<16x1xf32>
    %20 = arith.mulf %19, %19 : vector<16x1xf32>
    %cst_12 = arith.constant 1.000000e+00 : f32
    %21 = vector.broadcast %cst_12 : f32 to vector<16x1xf32>
    %22 = arith.subf %21, %20 : vector<16x1xf32>
    %cst_13 = arith.constant 0.000000e+00 : f32
    %cst_14 = arith.constant 1.000000e+00 : f32
    %23 = vector.broadcast %cst_13 : f32 to vector<16x1xf32>
    %24 = arith.maximumf %23, %22 : vector<16x1xf32>
    %25 = vector.broadcast %cst_14 : f32 to vector<16x1xf32>
    %26 = arith.minimumf %25, %24 : vector<16x1xf32>
    %27 = math.sqrt %26 : vector<16x1xf32>
    %cst_15 = arith.constant 0.87758255 : f32
    %28 = vector.broadcast %cst_15 : f32 to vector<16x1xf32>
    %29 = arith.mulf %19, %28 : vector<16x1xf32>
    %cst_16 = arith.constant 0.47942555 : f32
    %30 = vector.broadcast %cst_16 : f32 to vector<16x1xf32>
    %31 = arith.mulf %27, %30 : vector<16x1xf32>
    %32 = arith.subf %29, %31 : vector<16x1xf32>
    %cst_17 = arith.constant -0.87758255 : f32
    %33 = vector.broadcast %cst_17 : f32 to vector<16x1xf32>
    %34 = arith.cmpf ogt, %19, %33 : vector<16x1xf32>
    %cst_18 = arith.constant 0.239712775 : f32
    %35 = vector.broadcast %cst_18 : f32 to vector<16x1xf32>
    %36 = arith.subf %19, %35 : vector<16x1xf32>
    %37 = arith.select %34, %32, %36 : vector<16x1xi1>, vector<16x1xf32>
    %cst_19 = arith.constant 6.400000e+01 : f32
    %38 = vector.broadcast %cst_19 : f32 to vector<16x1xf32>
    %39 = arith.mulf %37, %38 : vector<16x1xf32>
    %cst_20 = arith.constant 6.400000e+01 : f32
    %40 = vector.broadcast %cst_20 : f32 to vector<16x128xf32>
    %41 = arith.mulf %9, %40 : vector<16x128xf32>
    %42 = vector.shape_cast %39 : vector<16x1xf32> to vector<16x1xf32>
    %43 = vector.broadcast %42 : vector<16x1xf32> to vector<16x128xf32>
    %44 = arith.select %15, %43, %41 : vector<16x128xi1>, vector<16x128xf32>
    %c0_21 = arith.constant 0 : index
    %c0_22 = arith.constant 0 : index
    %c0_23 = arith.constant 0 : index
    %45 = vector.load %arg6[%c0_21, %c0_22, %c0_23] : memref<1x16x128xf32, #tpu.memory_space<vmem>>, vector<1x16x128xf32>
    %46 = vector.shape_cast %45 : vector<1x16x128xf32> to vector<16x128xf32>
    %47 = vector.shape_cast %44 : vector<16x128xf32> to vector<1x16x128xf32>
    tpu.vector_store %arg6[%c0_21, %c0_22, %c0_23], %47 {strides = array<i32>} : memref<1x16x128xf32, #tpu.memory_space<vmem>>, vector<1x16x128xf32>,
    return
  }
  func.func @transform_0(%arg0: i32, %arg1: i32) -> (i32, i32, i32) {
    %c0_i32 = arith.constant 0 : i32
    %c0_i32_0 = arith.constant 0 : i32
    %c0_i32_1 = arith.constant 0 : i32
    return %arg0, %c0_i32, %c0_i32_0 : i32, i32, i32
  }
  func.func @transform_1(%arg0: i32, %arg1: i32) -> (i32, i32, i32) {
    %c0_i32 = arith.constant 0 : i32
    %c0_i32_0 = arith.constant 0 : i32
    return %arg0, %c0_i32, %arg1 : i32, i32, i32
  }
  func.func @transform_2(%arg0: i32, %arg1: i32) -> (i32, i32, i32) {
    %c0_i32 = arith.constant 0 : i32
    %c0_i32_0 = arith.constant 0 : i32
    return %arg0, %c0_i32, %arg1 : i32, i32, i32
  }
  func.func @transform_3(%arg0: i32, %arg1: i32) -> (i32, i32) {
    %c0_i32 = arith.constant 0 : i32
    %c0_i32_0 = arith.constant 0 : i32
    %c0_i32_1 = arith.constant 0 : i32
    return %c0_i32, %c0_i32_0 : i32, i32
  }
  func.func @transform_4(%arg0: i32, %arg1: i32) -> (i32, i32, i32) {
    %c0_i32 = arith.constant 0 : i32
    %c0_i32_0 = arith.constant 0 : i32
    return %arg0, %c0_i32, %arg1 : i32, i32, i32
  }
}

</mosaic_0001>

<llo_original>
// kernel: tpu_custom_call.1
$region0: #{tpu_custom_call.1}
  #allocation0 [shape = 'u32[]', space=smem, size = 0x4, offset = 0x4, fixed_abs, tag = 'smem constant byte address 0x4 - core index']
  #allocation1 [shape = 'u32[144,128]{1,0:T(1,128)}', space=vmem, size = 0x12000, scoped, tag = 'internal scratch']
  %s0 = inlined_call_operand.hbm [shape: bf16[4,16,128], index: 0, kind: input, shape index: {}]
  %s1 = inlined_call_operand.hbm [shape: bf16[4,128,128], index: 1, kind: input, shape index: {}]
  %s2 = inlined_call_operand.vmem [shape: f32[4,1,128], index: 2, kind: input, shape index: {}]
  %s3 = inlined_call_operand.vmem [shape: s32[16,1], index: 3, kind: input, shape index: {}]
  %s4 = inlined_call_operand.hbm [shape: f32[4,16,128], index: 4, kind: output, shape index: {}]
  %s5 = sld [smem:[#allocation0]]
  $region57: #{tpu_custom_call.1} parent=0
    _
  %s7 = ssub.s32 1, %s5
  %s8 = scalar_select 0, %s7, %s5
  $region1: #{tpu_custom_call.1} parent=0
    #allocation2 [shape = 'u8[8192]{0}', space=vmem, size = 0x2000, scoped, tag = 'input window, operand 0']
    #allocation3 [shape = 's32[2]{0}', space=sflag, size = 0x8, scoped, tag = 'scoped memory for tpu_custom_call.1']
    #allocation4 [shape = 's32[2]{0}', space=sflag, size = 0x8, scoped, tag = 'scoped memory for tpu_custom_call.1']
    #allocation5 [shape = 'u8[65536]{0}', space=vmem, size = 0x10000, scoped, tag = 'input window, operand 1']
    #allocation6 [shape = 's32[2]{0}', space=sflag, size = 0x8, scoped, tag = 'scoped memory for tpu_custom_call.1']
    #allocation7 [shape = 'u8[16384]{0}', space=vmem, size = 0x4000, scoped, tag = 'output window, operand 0']
    %9 = vsyncpa [#allocation3], 0
    %s10 = scalar_lea.sflag [#allocation3], 1
    %11 = vsyncpa %s10, 0
    %12 = vsyncpa [#allocation6], 0
    %s13 = scalar_lea.sflag [#allocation6], 1
    %14 = vsyncpa %s13, 0
    %15 = vsyncpa [#allocation4], 0
    %s16 = scalar_lea.sflag [#allocation4], 1
    %17 = vsyncpa %s16, 0
    loop: start=0, step=1, limit=6
    $region2: #{tpu_custom_call.1} parent=1 // loop_pre_header
      _
    $region3: #{tpu_custom_call.1} parent=1 // loop_header
      %s19 = sphi 0, %s23
      %p20 = scmp.ge.s32.totalorder %s19, 6
      %s26 = sphi 0, %s38
      %s27 = sphi 0, %s34
      %s28 = sphi 0, %s26
      %s29 = sphi 0, %s27
      %s30 = sphi 0, %s28
      %s31 = sphi 0, %s29
      %s41 = sphi 0, %s43
      %s44 = sphi 0, %s41
      %s45 = sphi 0, %s44
      %s61 = sphi 0, %s45
      %s69 = sphi 0, %s71
      %s72 = sphi 0, %s69
      %s73 = sphi 0, %s72
      %s89 = sphi 0, %s73
      %s97 = sphi 0, %s99
      %s100 = sphi 0, %s97
      %s101 = sphi 0, %s100
      %s117 = sphi 0, %s101
      %s121 = sphi 0, %s121
      %s123 = sphi 0, %s121
      %s124 = sphi 0, %s123
      %s138 = sphi 0, %s124
      %s146 = sphi 0, %s148
      %s149 = sphi 0, %s146
      %s150 = sphi 0, %s149
      %s166 = sphi 0, %s150
    $region4: #{tpu_custom_call.1} parent=1 // loop_header_branch
      %22 = sbr.rel (%p20) target = $region8
    $region5: #{tpu_custom_call.1} parent=1 // loop_body
      %s24 = ssub.s32 %s19, 1
      %s25 = ssub.s32 %s19, 2
      %s32 = sadd.s32 1, %s27
      %p33 = scmp.ge.s32.totalorder %s32, 1
      %s34 = scalar_select %p33, 0, %s32
      %s35 = sadd.s32 1, %s26
      %s36 = scalar_select %p33, %s35, %s26
      %p37 = scmp.ge.s32.totalorder %s36, 4
      %s38 = scalar_select %p37, 0, %s36
      %s39 = ssub.s32 %s26, %s38
      %p40 = scmp.eq.s32.totalorder %s39, 0
      %s42 = sadd.s32 %s41, 1
      %s43 = scalar_select %p40, %s41, %s42
      %p46 = pneg %p40
      %p47 = scmp.eq.s32.totalorder %s19, 3
      %p48 = por %p46, %p47
      %p49 = scmp.ne.s32.totalorder %s41, %s44
      %p50 = scmp.eq.s32.totalorder %s19, 0
      %p51 = por %p49, %p50
      %p52 = scmp.ne.s32.totalorder %s41, %s44
      %p53 = scmp.eq.s32.totalorder %s24, 3
      %p54 = por %p52, %p53
      %p55 = scmp.ne.s32.totalorder %s44, %s45
      %p56 = scmp.eq.s32.totalorder %s24, 0
      %p57 = por %p55, %p56
      %p58 = scmp.ne.s32.totalorder %s44, %s45
      %p59 = scmp.eq.s32.totalorder %s25, 3
      %p60 = por %p58, %p59
      %p62 = scmp.ne.s32.totalorder %s45, %s61
      %p63 = scmp.eq.s32.totalorder %s25, 0
      %p64 = por %p62, %p63
      %s65 = ssub.s32 %s26, %s38
      %s66 = ssub.s32 %s27, %s34
      %s67 = sor.u32 %s65, %s66
      %p68 = scmp.eq.s32.totalorder %s67, 0
      %s70 = sadd.s32 %s69, 1
      %s71 = scalar_select %p68, %s69, %s70
      %p74 = pneg %p68
      %p75 = scmp.eq.s32.totalorder %s19, 3
      %p76 = por %p74, %p75
      %p77 = scmp.ne.s32.totalorder %s69, %s72
      %p78 = scmp.eq.s32.totalorder %s19, 0
      %p79 = por %p77, %p78
      %p80 = scmp.ne.s32.totalorder %s69, %s72
      %p81 = scmp.eq.s32.totalorder %s24, 3
      %p82 = por %p80, %p81
      %p83 = scmp.ne.s32.totalorder %s72, %s73
      %p84 = scmp.eq.s32.totalorder %s24, 0
      %p85 = por %p83, %p84
      %p86 = scmp.ne.s32.totalorder %s72, %s73
      %p87 = scmp.eq.s32.totalorder %s25, 3
      %p88 = por %p86, %p87
      %p90 = scmp.ne.s32.totalorder %s73, %s89
      %p91 = scmp.eq.s32.totalorder %s25, 0
      %p92 = por %p90, %p91
      %s93 = ssub.s32 %s26, %s38
      %s94 = ssub.s32 %s27, %s34
      %s95 = sor.u32 %s93, %s94
      %p96 = scmp.eq.s32.totalorder %s95, 0
      %s98 = sadd.s32 %s97, 1
      %s99 = scalar_select %p96, %s97, %s98
      %p102 = pneg %p96
      %p103 = scmp.eq.s32.totalorder %s19, 3
      %p104 = por %p102, %p103
      %p105 = scmp.ne.s32.totalorder %s97, %s100
      %p106 = scmp.eq.s32.totalorder %s19, 0
      %p107 = por %p105, %p106
      %p108 = scmp.ne.s32.totalorder %s97, %s100
      %p109 = scmp.eq.s32.totalorder %s24, 3
      %p110 = por %p108, %p109
      %p111 = scmp.ne.s32.totalorder %s100, %s101
      %p112 = scmp.eq.s32.totalorder %s24, 0
      %p113 = por %p111, %p112
      %p114 = scmp.ne.s32.totalorder %s100, %s101
      %p115 = scmp.eq.s32.totalorder %s25, 3
      %p116 = por %p114, %p115
      %p118 = scmp.ne.s32.totalorder %s101, %s117
      %p119 = scmp.eq.s32.totalorder %s25, 0
      %p120 = por %p118, %p119
      %s122 = sadd.s32 %s121, 1
      %p125 = scmp.eq.s32.totalorder %s19, 3
      %p126 = scmp.ne.s32.totalorder %s121, %s123
      %p127 = scmp.eq.s32.totalorder %s19, 0
      %p128 = por %p126, %p127
      %p129 = scmp.ne.s32.totalorder %s121, %s123
      %p130 = scmp.eq.s32.totalorder %s24, 3
      %p131 = por %p129, %p130
      %p132 = scmp.ne.s32.totalorder %s123, %s124
      %p133 = scmp.eq.s32.totalorder %s24, 0
      %p134 = por %p132, %p133
      %p135 = scmp.ne.s32.totalorder %s123, %s124
      %p136 = scmp.eq.s32.totalorder %s25, 3
      %p137 = por %p135, %p136
      %p139 = scmp.ne.s32.totalorder %s124, %s138
      %p140 = scmp.eq.s32.totalorder %s25, 0
      %p141 = por %p139, %p140
      %s142 = ssub.s32 %s26, %s38
      %s143 = ssub.s32 %s27, %s34
      %s144 = sor.u32 %s142, %s143
      %p145 = scmp.eq.s32.totalorder %s144, 0
      %s147 = sadd.s32 %s146, 1
      %s148 = scalar_select %p145, %s146, %s147
      %p151 = pneg %p145
      %p152 = scmp.eq.s32.totalorder %s19, 3
      %p153 = por %p151, %p152
      %p154 = scmp.ne.s32.totalorder %s146, %s149
      %p155 = scmp.eq.s32.totalorder %s19, 0
      %p156 = por %p154, %p155
      %p157 = scmp.ne.s32.totalorder %s146, %s149
      %p158 = scmp.eq.s32.totalorder %s24, 3
      %p159 = por %p157, %p158
      %p160 = scmp.ne.s32.totalorder %s149, %s150
      %p161 = scmp.eq.s32.totalorder %s24, 0
      %p162 = por %p160, %p161
      %p163 = scmp.ne.s32.totalorder %s149, %s150
      %p164 = scmp.eq.s32.totalorder %s25, 3
      %p165 = por %p163, %p164
      %p167 = scmp.ne.s32.totalorder %s150, %s166
      %p168 = scmp.eq.s32.totalorder %s25, 0
      %p169 = por %p167, %p168
      %p170 = scmp.le.s32.totalorder 1, %s19
      %p171 = scmp.lt.s32.totalorder %s19, 5
      %p172 = pnand %p170, %p171
      %p173 = pneg %p172
      // Predicated region
      $region9: #{tpu_custom_call.1} parent=5 // pred_check
        _
      $region10: #{tpu_custom_call.1} parent=5 // pred_check_branch
        %175 = sbr.rel (%p172) target = $region12
      $region11: #{tpu_custom_call.1} parent=5 // pred_region
        %s176 = ssub.s32 %s19, 1
        // Predicated region
        $region13: #{tpu_custom_call.1} parent=11 // pred_check
          %p177 = pneg %p134
        $region14: #{tpu_custom_call.1} parent=11 // pred_check_branch
          %179 = sbr.rel (%p177) target = $region16
        $region15: #{tpu_custom_call.1} parent=11 // pred_region
          _
        $region16: #{tpu_custom_call.1} parent=11 // pred_fallthru
          _
      $region12: #{tpu_custom_call.1} parent=5 // pred_fallthru
        _
      %p180 = scmp.lt.s32.totalorder %s19, 4
      // Predicated region
      $region17: #{tpu_custom_call.1} parent=5 // pred_check
        %p181 = pneg %p180
      $region18: #{tpu_custom_call.1} parent=5 // pred_check_branch
        %183 = sbr.rel (%p181) target = $region20
      $region19: #{tpu_custom_call.1} parent=5 // pred_region
        // Predicated region
        $region21: #{tpu_custom_call.1} parent=19 // pred_check
          %p184 = pneg %p51
        $region22: #{tpu_custom_call.1} parent=19 // pred_check_branch
          %186 = sbr.rel (%p184) target = $region24
        $region23: #{tpu_custom_call.1} parent=19 // pred_region
          %s187 = sand.u32 %s41, 1
          %s188 = scalar_lea.sflag [#allocation3], %s187
          %s189 = sand.u32 %s41, 1
          %s190 = smul.addr %s189, 8
          %s191 = scalar_lea.vmem [#allocation2], %s190
          %s193 = ssub.s32 128, 128
          %194 = vsyncadd %s188, %s193
          %s195 = smul.addr %s26, 2
          %s196 = smul.addr %s195, 64
          %s197 = scalar_lea.hbm %s0, %s196
          %s198 = sshll.u32 %s191, 4
          %s199 = int_to_ptr.vmem [resolvable:$true] %s198
          %204 = dma.hbm_to_vmem [thread:$0]  %s197, 128, %s199, %s188, 64, 64, 4
        $region24: #{tpu_custom_call.1} parent=19 // pred_fallthru
          _
        // Predicated region
        $region25: #{tpu_custom_call.1} parent=19 // pred_check
          %p205 = pneg %p79
        $region26: #{tpu_custom_call.1} parent=19 // pred_check_branch
          %207 = sbr.rel (%p205) target = $region28
        $region27: #{tpu_custom_call.1} parent=19 // pred_region
          %s208 = sand.u32 %s69, 1
          %s209 = scalar_lea.sflag [#allocation6], %s208
          %s210 = sand.u32 %s69, 1
          %s211 = smul.addr %s210, 64
          %s212 = scalar_lea.vmem [#allocation5], %s211
          %s214 = ssub.s32 1024, 1024
          %215 = vsyncadd %s209, %s214
          %s216 = smul.addr %s26, 16
          %s217 = sadd.s32 %s27, %s216
          %s218 = smul.addr %s217, 64
          %s219 = scalar_lea.hbm %s1, %s218
          %s220 = sshll.u32 %s212, 4
          %s221 = int_to_ptr.vmem [resolvable:$true] %s220
          %226 = dma.hbm_to_vmem [thread:$0]  %s219, 1024, %s221, %s209, 64, 64, 4
        $region28: #{tpu_custom_call.1} parent=19 // pred_fallthru
          _
        // Predicated region
        $region29: #{tpu_custom_call.1} parent=19 // pred_check
          %p227 = pneg %p107
        $region30: #{tpu_custom_call.1} parent=19 // pred_check_branch
          %229 = sbr.rel (%p227) target = $region32
        $region31: #{tpu_custom_call.1} parent=19 // pred_region
          %p230 = scmp.lt.s32.totalorder %s26, 3
          %s231 = scalar_select %p230, %s26, 3
          %p232 = scmp.lt.s32.totalorder %s27, 0
          %s233 = scalar_select %p232, %s27, 0
          %s234 = sadd.s32 %s233, %s231
          %s235 = scalar_lea.vmem %s2, %s234
        $region32: #{tpu_custom_call.1} parent=19 // pred_fallthru
          _
      $region20: #{tpu_custom_call.1} parent=5 // pred_fallthru
        _
      %p236 = scmp.le.s32.totalorder 1, %s19
      %p237 = scmp.lt.s32.totalorder %s19, 5
      %p238 = pnand %p236, %p237
      %p239 = pneg %p238
      // Predicated region
      $region33: #{tpu_custom_call.1} parent=5 // pred_check
        _
      $region34: #{tpu_custom_call.1} parent=5 // pred_check_branch
        %241 = sbr.rel (%p238) target = $region36
      $region35: #{tpu_custom_call.1} parent=5 // pred_region
        %s242 = ssub.s32 %s19, 1
        %s243 = sand.u32 %s44, 1
        %s244 = scalar_lea.sflag [#allocation3], %s243
        %s245 = sand.u32 %s44, 1
        %s246 = smul.addr %s245, 8
        %s247 = scalar_lea.vmem [#allocation2], %s246
        // Predicated region
        $region37: #{tpu_custom_call.1} parent=35 // pred_check
          %p248 = pneg %p57
        $region38: #{tpu_custom_call.1} parent=35 // pred_check_branch
          %250 = sbr.rel (%p248) target = $region40
        $region39: #{tpu_custom_call.1} parent=35 // pred_region
          %251 = dma.done %s244, 128
        $region40: #{tpu_custom_call.1} parent=35 // pred_fallthru
          _
        %s252 = sand.u32 %s72, 1
        %s253 = scalar_lea.sflag [#allocation6], %s252
        %s254 = sand.u32 %s72, 1
        %s255 = smul.addr %s254, 64
        %s256 = scalar_lea.vmem [#allocation5], %s255
        // Predicated region
        $region41: #{tpu_custom_call.1} parent=35 // pred_check
          %p257 = pneg %p85
        $region42: #{tpu_custom_call.1} parent=35 // pred_check_branch
          %259 = sbr.rel (%p257) target = $region44
        $region43: #{tpu_custom_call.1} parent=35 // pred_region
          %260 = dma.done %s253, 1024
        $region44: #{tpu_custom_call.1} parent=35 // pred_fallthru
          _
        %s261 = sand.u32 %s44, 1
        %s262 = scalar_lea.sflag [#allocation3], %s261
        %s263 = sand.u32 %s44, 1
        %s264 = smul.addr %s263, 8
        %s265 = scalar_lea.vmem [#allocation2], %s264
        %p266 = pneg %p57
        %p267 = pneg %p54
        %s268 = sand.u32 %s72, 1
        %s269 = scalar_lea.sflag [#allocation6], %s268
        %s270 = sand.u32 %s72, 1
        %s271 = smul.addr %s270, 64
        %s272 = scalar_lea.vmem [#allocation5], %s271
        %p273 = pneg %p85
        %p274 = pneg %p82
        %p275 = scmp.lt.s32.totalorder %s28, 3
        %s276 = scalar_select %p275, %s28, 3
        %p277 = scmp.lt.s32.totalorder %s29, 0
        %s278 = scalar_select %p277, %s29, 0
        %s279 = sadd.s32 %s278, %s276
        %s280 = scalar_lea.vmem %s2, %s279
        %p281 = pneg %p113
        %p282 = pneg %p110
        %p283 = pneg %p134
        %p284 = pneg %p131
        %p285 = pneg %p162
        %p286 = pneg %p159
        %s287 = sand.u32 %s149, 1
        %s288 = scalar_lea.sflag [#allocation4], %s287
        %s289 = sand.u32 %s149, 1
        %s290 = smul.addr %s289, 16
        %s291 = scalar_lea.vmem [#allocation7], %s290
        %p292 = scmp.lt.s32.totalorder %s28, 3
        %s293 = scalar_select %p292, %s28, 3
        %p294 = scmp.lt.s32.totalorder %s29, 0
        %s295 = scalar_select %p294, %s29, 0
        %s296 = sadd.s32 %s295, %s293
        %s297 = scalar_lea.vmem %s2, %s296
        %s299 = smul.u32 %s29, 128
        %v300 = vld [vmem:[%s247] sm:$0xf]
        %v301 = vld [vmem:[%s247 + $0x4] sm:$0xf]
        %v302 = vld [vmem:[%s256] sm:$0xf]
        %v303 = vld [vmem:[%s256 + $0x4] sm:$0xf]
        %v304 = vld [vmem:[%s256 + $0x8] sm:$0xf]
        %v305 = vld [vmem:[%s256 + $0xc] sm:$0xf]
        %v306 = vld [vmem:[%s256 + $0x10] sm:$0xf]
        %v307 = vld [vmem:[%s256 + $0x14] sm:$0xf]
        %v308 = vld [vmem:[%s256 + $0x18] sm:$0xf]
        %v309 = vld [vmem:[%s256 + $0x1c] sm:$0xf]
        %v310 = vld [vmem:[%s256 + $0x20] sm:$0xf]
        %v311 = vld [vmem:[%s256 + $0x24] sm:$0xf]
        %v312 = vld [vmem:[%s256 + $0x28] sm:$0xf]
        %v313 = vld [vmem:[%s256 + $0x2c] sm:$0xf]
        %v314 = vld [vmem:[%s256 + $0x30] sm:$0xf]
        %v315 = vld [vmem:[%s256 + $0x34] sm:$0xf]
        %v316 = vld [vmem:[%s256 + $0x38] sm:$0xf]
        %v317 = vld [vmem:[%s256 + $0x3c] sm:$0xf]
        %v320 = vunpack.c.l.b16 %v300
        %v321 = vunpack.c.l.b16 %v301
        %v322 = vpack.c.b16 %v321, %v320
        %v340 = vunpack.c.l.b16 %v302
        %v341 = vunpack.c.l.b16 %v303
        %v342 = vunpack.c.l.b16 %v304
        %v343 = vunpack.c.l.b16 %v305
        %v344 = vunpack.c.l.b16 %v306
        %v345 = vunpack.c.l.b16 %v307
        %v346 = vunpack.c.l.b16 %v308
        %v347 = vunpack.c.l.b16 %v309
        %v348 = vunpack.c.l.b16 %v310
        %v349 = vunpack.c.l.b16 %v311
        %v350 = vunpack.c.l.b16 %v312
        %v351 = vunpack.c.l.b16 %v313
        %v352 = vunpack.c.l.b16 %v314
        %v353 = vunpack.c.l.b16 %v315
        %v354 = vunpack.c.l.b16 %v316
        %v355 = vunpack.c.l.b16 %v317
        %v356 = vpack.c.b16 %v341, %v340
        %v357 = vpack.c.b16 %v343, %v342
        %v358 = vpack.c.b16 %v345, %v344
        %v359 = vpack.c.b16 %v347, %v346
        %v360 = vpack.c.b16 %v349, %v348
        %v361 = vpack.c.b16 %v351, %v350
        %v362 = vpack.c.b16 %v353, %v352
        %v363 = vpack.c.b16 %v355, %v354
        %372 = vmatprep.subr.bf16.mxu0 0
        %373 = vmatpush1.bf16.msra.mxu0 %v356
        %374 = vmatprep.subr.bf16.mxu0 0
        %375 = vmatpush1.bf16.msra.mxu0 %v357
        %376 = vmatprep.subr.bf16.mxu0 0
        %377 = vmatpush1.bf16.msra.mxu0 %v358
        %378 = vmatprep.subr.bf16.mxu0 0
        %379 = vmatpush1.bf16.msra.mxu0 %v359
        %380 = vmatprep.subr.bf16.mxu0 0
        %381 = vmatpush1.bf16.msra.mxu0 %v360
        %382 = vmatprep.subr.bf16.mxu0 0
        %383 = vmatpush1.bf16.msra.mxu0 %v361
        %384 = vmatprep.subr.bf16.mxu0 0
        %385 = vmatpush1.bf16.msra.mxu0 %v362
        %386 = vmatprep.subr.bf16.mxu0 0
        %387 = vmatpush1.bf16.msra.mxu0 %v363
        %388 = vmatprep.subr.bf16.mxu0 0
        %389 = vmatpush1.bf16.msra.mxu0 0
        %390 = vmatprep.subr.bf16.mxu0 0
        %391 = vmatpush1.bf16.msra.mxu0 0
        %392 = vmatprep.subr.bf16.mxu0 0
        %393 = vmatpush1.bf16.msra.mxu0 0
        %394 = vmatprep.subr.bf16.mxu0 0
        %395 = vmatpush1.bf16.msra.mxu0 0
        %396 = vmatprep.subr.bf16.mxu0 0
        %397 = vmatpush1.bf16.msra.mxu0 0
        %398 = vmatprep.subr.bf16.mxu0 0
        %399 = vmatpush1.bf16.msra.mxu0 0
        %400 = vmatprep.subr.bf16.mxu0 0
        %401 = vmatpush1.bf16.msra.mxu0 0
        %402 = vmatprep.subr.bf16.mxu0 0
        %403 = vmatpush1.bf16.msra.mxu0 0
        %404 = vmatprep.mubr.bf16.mxu0 0
        %405 = vmatmul.mubr.bf16.gmra.mrb[0].mxu0 %v322
        %v406 = vpop.f32.mrb[0].mxu0
        %v407 = vadd.f32 0.0, %v406
        %v408 = vpop.f32.mrb[0].mxu0
        %v409 = vpop.f32.mrb[0].mxu0
        %v410 = vadd.f32 0.0, %v409
        %v411 = vpop.f32.mrb[0].mxu0
        %412 = vdwg.mxu0
        %v413 = vld [vmem:[%s297] sm:$0x1]
        %v415 = vlaneseq
        %v416 = vshrl.u32 %v415, 7
        %v417 = vsub.s32 0, %v416
        %v418 = vrot.slane %v413, %v417
        %v420 = vmul.f32 %v407, %v418
        %v421 = vmul.f32 %v410, %v418
        %v422 = vld [vmem:[%s3] sm:$0xff]
        %v423 = vld [vmem:[%s3 + $0x8] sm:$0xff]
        %v424 = vlaneseq
        %v425 = vand.u32 %v424, 127
        %v426 = vstv %s299
        %v427 = vadd.s32 %v426, %v425
        %428 = vset.pattern.permute.xlu0 0
        %429 = vperm.xlu0 %428, %v422
        %v430 = vpop.permute.xlu0 %429
        %431 = vset.pattern.permute.xlu0 0
        %432 = vperm.xlu0 %431, %v423
        %v433 = vpop.permute.xlu0 %432
        %vm434 = vcmp.eq.s32.totalorder %v427, %v430
        %vm435 = vcmp.eq.s32.totalorder %v427, %v433
        %v436 = vsel %vm434, %v420, -2.0
        %v437 = vsel %vm435, %v421, -2.0
        %438 = vmax.xlane.f32.xlu0 %v436
        %v439 = vpop.xlane.xlu0 %438
        %440 = vmax.xlane.f32.xlu0 %v437
        %v441 = vpop.xlane.xlu0 %440
        %v442 = vmul.f32 %v439, %v439
        %v443 = vmul.f32 %v441, %v441
        %v444 = vsub.f32 1.0, %v442
        %v445 = vsub.f32 1.0, %v443
        %v446 = vmax.f32 %v444, 0.0
        %v447 = vmax.f32 %v445, 0.0
        %v448 = vmin.f32 %v446, 1.0
        %v449 = vmin.f32 %v447, 1.0
        %v450 = vrsqrt.pop %v448
        %v451 = vmul.f32 %v448, %v450
        %vm452 = vcmp.eq.f32.partialorder %v448, inf
        %v453 = vsel %vm452, %v448, %v451
        %vm454 = vcmp.eq.f32.partialorder %v448, 0.0
        %v455 = vand.u32 %v448, 2147483648
        %v456 = vsel %vm454, %v455, %v453
        %v457 = vrsqrt.pop %v449
        %v458 = vmul.f32 %v449, %v457
        %vm459 = vcmp.eq.f32.partialorder %v449, inf
        %v460 = vsel %vm459, %v449, %v458
        %vm461 = vcmp.eq.f32.partialorder %v449, 0.0
        %v462 = vand.u32 %v449, 2147483648
        %v463 = vsel %vm461, %v462, %v460
        %v464 = vmul.f32 %v439, 0.87758255
        %v465 = vmul.f32 %v441, 0.87758255
        %v466 = vmul.f32 %v456, 0.47942555
        %v467 = vmul.f32 %v463, 0.47942555
        %v468 = vsub.f32 %v464, %v466
        %v469 = vsub.f32 %v465, %v467
        %vm470 = vcmp.gt.f32.partialorder %v439, -0.87758255
        %vm471 = vcmp.gt.f32.partialorder %v441, -0.87758255
        %v472 = vsub.f32 %v439, 0.23971277
        %v473 = vsub.f32 %v441, 0.23971277
        %v474 = vsel %vm470, %v468, %v472
        %v475 = vsel %vm471, %v469, %v473
        %v476 = vmul.f32 %v474, 64.0
        %v477 = vmul.f32 %v475, 64.0
        %v478 = vmul.f32 %v420, 64.0
        %v479 = vmul.f32 %v421, 64.0
        %v480 = vsel %vm434, %v476, %v478
        %v481 = vsel %vm435, %v477, %v479
        %482 = vst [vmem:[%s291] sm:$0xff] %v480
        %483 = vst [vmem:[%s291 + $0x8] sm:$0xff] %v481
        %s484 = sand.u32 %s149, 1
        %s485 = scalar_lea.sflag [#allocation4], %s484
        %s486 = sand.u32 %s149, 1
        %s487 = smul.addr %s486, 16
        %s488 = scalar_lea.vmem [#allocation7], %s487
        // Predicated region
        $region45: #{tpu_custom_call.1} parent=35 // pred_check
          %p489 = pneg %p159
        $region46: #{tpu_custom_call.1} parent=35 // pred_check_branch
          %491 = sbr.rel (%p489) target = $region48
        $region47: #{tpu_custom_call.1} parent=35 // pred_region
          %s493 = ssub.s32 256, 256
          %494 = vsyncadd %s485, %s493
          %s495 = smul.addr %s28, 2
          %s496 = sadd.s32 %s29, %s495
          %s497 = smul.addr %s496, 128
          %s498 = scalar_lea.hbm %s4, %s497
          %s499 = sshll.u32 %s488, 4
          %s500 = int_to_ptr.vmem [resolvable:$true] %s499
          %505 = dma.vmem_to_hbm [thread:$0]  %s500, 256, %s498, %s485, 128, 128, 8
        $region48: #{tpu_custom_call.1} parent=35 // pred_fallthru
          _
      $region36: #{tpu_custom_call.1} parent=5 // pred_fallthru
        _
      %p506 = scmp.le.s32.totalorder 2, %s19
      // Predicated region
      $region49: #{tpu_custom_call.1} parent=5 // pred_check
        %p507 = pneg %p506
      $region50: #{tpu_custom_call.1} parent=5 // pred_check_branch
        %509 = sbr.rel (%p507) target = $region52
      $region51: #{tpu_custom_call.1} parent=5 // pred_region
        %s510 = ssub.s32 %s19, 2
        // Predicated region
        $region53: #{tpu_custom_call.1} parent=51 // pred_check
          %p511 = pneg %p165
        $region54: #{tpu_custom_call.1} parent=51 // pred_check_branch
          %513 = sbr.rel (%p511) target = $region56
        $region55: #{tpu_custom_call.1} parent=51 // pred_region
          %s514 = sand.u32 %s150, 1
          %s515 = scalar_lea.sflag [#allocation4], %s514
          %s516 = sand.u32 %s150, 1
          %s517 = smul.addr %s516, 16
          %s518 = scalar_lea.vmem [#allocation7], %s517
          %519 = dma.done %s515, 256
        $region56: #{tpu_custom_call.1} parent=51 // pred_fallthru
          _
      $region52: #{tpu_custom_call.1} parent=5 // pred_fallthru
        _
    $region6: #{tpu_custom_call.1} parent=1 // loop_footer
      %s23 = sadd.s32 1, %s19
    $region7: #{tpu_custom_call.1} parent=1 // loop_footer_branch
      %18 = sbr.rel target = $region3
    $region8: #{tpu_custom_call.1} parent=1 // loop_exit
      _
    %520 = vsyncpa [#allocation3], 1
    %s521 = scalar_lea.sflag [#allocation3], 1
    %522 = vsyncpa %s521, 1
    %523 = vsyncpa [#allocation6], 1
    %s524 = scalar_lea.sflag [#allocation6], 1
    %525 = vsyncpa %s524, 1
    %526 = vsyncpa [#allocation4], 1
    %s527 = scalar_lea.sflag [#allocation4], 1
    %528 = vsyncpa %s527, 1

</llo_original>
